<compile_context>
chip_gen: v6e
topology: v6e:2x2x1
jax: 0.10.0
libtpu: 0.0.40
codegen_flags: <defaults>
</compile_context>

<pallas_src>
import jax
import jax.numpy as jnp
from jax import lax
from jax.experimental import pallas as pl
from jax.experimental.pallas import tpu as pltpu


def _round_up(n, m):
    return -(-n // m) * m


def _num_tensorcores():
    """Best-effort TensorCore-per-device count (1 on v5e/v6e, 2 on v7x/v4)."""
    try:
        info = pltpu.get_tpu_info()
        for attr in ("num_tensorcores", "tensorcore_count", "num_cores",
                     "cores_per_chip"):
            v = getattr(info, attr, None)
            if isinstance(v, int) and v > 0:
                return v
    except Exception:
        pass
    try:
        kind = jax.devices()[0].device_kind.lower()
        if "v4" in kind or "7" in kind:
            return 2
    except Exception:
        pass
    return 1


def _make_mlp_kernel(n_layers):
    """Fused MLP kernel for a fixed number of Linear layers.

    refs = (x_ref, w0, b0, w1, b1, ..., w_{L-1}, b_{L-1}, out_ref)

    x_ref : f32  [tile, n_input]      (natural layout; cast/transpose in-kernel)
    hidden: w_i  bf16 [out_i, in_i]   (PyTorch orientation), b_i f32 [out_i, 1]
    final : w_L  f32  [in_last, 1],   b_L f32 [1, 1]
    out   : f32  [1, tile]            (lane-dense row, batch on lanes)
    """
    n_hidden = n_layers - 1

    def kernel(*refs):
        x_ref = refs[0]
        o_ref = refs[-1]

        xb = x_ref[...].astype(jnp.bfloat16)              # bf16 [tile, in]

        if n_hidden == 0:
            # Degenerate model: a single Linear(n_input, 1).
            w = refs[1][...]                               # f32 [in, 1]
            b = refs[2][...]                               # f32 [1, 1]
            s = lax.dot_general(w.astype(jnp.float32).T,
                                x_ref[...].astype(jnp.float32),
                                (((1,), (1,)), ((), ())),
                                preferred_element_type=jnp.float32)  # [1, tile]
            o_ref[...] = (s + b).astype(o_ref.dtype)
            return

        # Hidden layer 0: contract feature axes of w0 [out0, in] and x [tile, in]
        # -> [out0, tile]; the transpose happens inside the MXU contraction.
        w0 = refs[1][...]                                  # bf16 [out0, in]
        b0 = refs[2][...]                                  # f32  [out0, 1]
        h = lax.dot_general(w0, xb, (((1,), (1,)), ((), ())),
                            preferred_element_type=jnp.float32)
        h = jnp.maximum(h + b0, 0.0)
        if n_hidden > 1:                                   # only recast if MXU consumes it
            h = h.astype(jnp.bfloat16)

        # Remaining hidden layers.
        for i in range(1, n_hidden):
            w = refs[1 + 2 * i][...]                       # bf16 [out_i, in_i]
            b = refs[2 + 2 * i][...]                       # f32  [out_i, 1]
            h = jnp.dot(w, h, preferred_element_type=jnp.float32) + b
            h = jnp.maximum(h, 0.0)
            if i < n_hidden - 1:                           # last hidden stays f32
                h = h.astype(jnp.bfloat16)

        # Final Linear(·, 1): VPU multiply + sublane (XLU) reduce instead of an
        # N=1 MXU matmul; result is already lane-dense (1, tile).
        w_last = refs[1 + 2 * n_hidden][...]               # f32 [in_last, 1]
        b_last = refs[2 + 2 * n_hidden][...]               # f32 [1, 1]
        s = jnp.sum(h * w_last, axis=0, keepdims=True)     # [1, tile]
        o_ref[...] = (s + b_last).astype(o_ref.dtype)

    return kernel


def mlp_forward(x, weights, biases, *, batch_tile=512):
    """Run the fused MLP Pallas kernel.

    x:       [B, n_input] float32 (natural layout, no wrapper preprocessing)
    weights: hidden layers bf16 [out_i, in_i] (PyTorch orientation),
             final layer f32 [in_last, 1]
    biases:  hidden layers f32 [out_i, 1], final layer f32 [1, 1]
    returns: [B, 1] float32
    """
    B, n_input = x.shape
    n_layers = len(weights)

    # ---- batch-tile / grid selection ---------------------------------------
    # vreg-pressure ceiling: with hidden dims > 64 the f32 activation slab at
    # tile=512 pushes past ~56/64 vregs, so cap the tile at 256 there.
    hidden_dims = [w.shape[0] for w in weights[:-1]] or [0]
    if max(hidden_dims) > 64:
        batch_tile = min(batch_tile, 256)
    batch_tile = max(128, (batch_tile // 128) * 128)

    b128 = _round_up(max(B, 1), 128)          # lane-dense unit
    num_tc = _num_tensorcores()

    steps = pl.cdiv(b128, batch_tile)
    if num_tc >= 2 and b128 >= 256:
        # 2 TensorCores (v7x / megacore): keep an even-ish number of steps so
        # both cores get work.  Single-TC (v5e/v6e): fewest steps possible --
        # the kernel is dominated by the ~0.35 us per-grid-step overhead.
        steps = max(2, steps + (steps % 2))
    tile = _round_up(pl.cdiv(b128, steps), 128)
    steps = pl.cdiv(b128, tile)               # never creates fully-OOB blocks
    b_out = steps * tile
    grid = (steps,)

    kernel = _make_mlp_kernel(n_layers)

    # x tiled over batch rows (second-minor axis); weights/biases are full,
    # constant-index VMEM blocks.
    in_specs = [pl.BlockSpec((tile, n_input), lambda i: (i, 0))]
    operands = [x]
    for w, b in zip(weights, biases):
        in_specs.append(pl.BlockSpec(w.shape, lambda i: (0, 0)))
        in_specs.append(pl.BlockSpec(b.shape, lambda i: (0, 0)))
        operands.append(w)
        operands.append(b)

    # Lane-dense output: one row, batch on the 128-lane axis.
    out_spec = pl.BlockSpec((1, tile), lambda i: (0, i))

    # Explicit VMEM budget (generous; only matters if the model scales up).
    nbytes = lambda a: int(a.size) * jnp.dtype(a.dtype).itemsize
    param_bytes = sum(nbytes(w) + nbytes(b) for w, b in zip(weights, biases))
    max_feat = max([n_input] + hidden_dims)
    est = (2 * tile * n_input * 4            # x tile, double-buffered
           + 2 * tile * 4                    # output row, double-buffered
           + 2 * param_bytes                 # params, double-buffered by default
           + 8 * tile * max_feat * 4)        # activation slabs / spill headroom
    vmem_limit = int(min(96 * 2**20, max(8 * 2**20, 4 * est)))

    out = pl.pallas_call(
        kernel,
        out_shape=jax.ShapeDtypeStruct((1, b_out), jnp.float32),
        grid_spec=pltpu.PrefetchScalarGridSpec(
            num_scalar_prefetch=0,
            grid=grid,
            in_specs=in_specs,
            out_specs=out_spec,
        ),
        compiler_params=pltpu.CompilerParams(
            dimension_semantics=("parallel",),
            vmem_limit_bytes=vmem_limit,
        ),
    )(*operands)

    return out[0, :B].reshape(B, 1)


def init_mlp_params(key, n_input, neurons):
    """Init mimicking nn.Linear's U(-1/sqrt(fan_in), +1/sqrt(fan_in)).

    Hidden weights kept in PyTorch orientation [out, in] as bf16 (MXU operands),
    hidden biases as [out, 1] f32.  Final Linear(·, 1) weight stored as an
    [in_last, 1] f32 column (VPU path), final bias [1, 1] f32.
    """
    dims = [n_input] + list(neurons) + [1]
    n_layers = len(dims) - 1
    weights, biases = [], []
    for i in range(n_layers):
        fan_in, fan_out = dims[i], dims[i + 1]
        key, kw, kb = jax.random.split(key, 3)
        bound = 1.0 / jnp.sqrt(jnp.float32(fan_in))
        w = jax.random.uniform(kw, (fan_out, fan_in), jnp.float32, -bound, bound)
        b = jax.random.uniform(kb, (fan_out, 1), jnp.float32, -bound, bound)
        if i < n_layers - 1:
            weights.append(w.astype(jnp.bfloat16))
            biases.append(b)
        else:
            weights.append(w.T)     # [in_last, 1] f32 column
            biases.append(b)        # [1, 1] f32
    return weights, biases


def mlp_reference(x, weights, biases):
    """Plain-JAX f32 reference with the same math as the PyTorch module."""
    h = x
    n_layers = len(weights)
    for i, (w, b) in enumerate(zip(weights, biases)):
        if i < n_layers - 1:
            h = jnp.maximum(h @ w.astype(jnp.float32).T + b.T, 0.0)
        else:
            h = h @ w + b.T
    return h


if __name__ == "__main__":
    # NeuralNetwork(32, 64, 32) -> Linear(32,64)+ReLU, Linear(64,32)+ReLU, Linear(32,1)
    n_input = 32
    neurons = (64, 32)

    key = jax.random.PRNGKey(0)
    key, kparams = jax.random.split(key)
    weights, biases = init_mlp_params(kparams, n_input, neurons)

    # batch=256 exercises the aligned multi-lane-tile path; batch=50 exercises
    # the small/ragged path (OOB padding lanes are computed and discarded).
    for batch in (256, 50):
        key, kx = jax.random.split(key)
        x = jax.random.normal(kx, (batch, n_input), jnp.float32)

        out = jax.block_until_ready(mlp_forward(x, weights, biases))
        ref = mlp_reference(x, weights, biases)

        assert out.shape == (batch, 1)
        # bf16 MXU operands -> loosened tolerance vs. the f32 reference.
        assert jnp.allclose(out, ref, atol=5e-2, rtol=5e-2), float(
            jnp.max(jnp.abs(out - ref)))

    print("KERNEL_OK")
</pallas_src>

<mosaic_0001>
module attributes {stable_mosaic.version = 11 : i64} {
  func.func @kernel(%arg0: i32, %arg1: memref<256x32xf32, #tpu.memory_space<vmem>>, %arg2: memref<64x32xbf16, #tpu.memory_space<vmem>>, %arg3: memref<64x1xf32, #tpu.memory_space<vmem>>, %arg4: memref<32x64xbf16, #tpu.memory_space<vmem>>, %arg5: memref<32x1xf32, #tpu.memory_space<vmem>>, %arg6: memref<32x1xf32, #tpu.memory_space<vmem>>, %arg7: memref<1x1xf32, #tpu.memory_space<vmem>>, %arg8: memref<1x256xf32, #tpu.memory_space<vmem>>) attributes {dimension_semantics = [#tpu.dimension_semantics<parallel>], iteration_bounds = array<i64: 1>, scalar_prefetch = 0 : i64, scratch_operands = 0 : i64, tpu.core_type = #tpu.core_type<tc>, window_params = [{transform_indices = @transform_0, window_bounds = array<i64: 256, 32>}, {pipeline_mode = #tpu.pipeline_mode<synchronous>, transform_indices = @transform_1, window_bounds = array<i64: 64, 32>}, {pipeline_mode = #tpu.pipeline_mode<synchronous>, transform_indices = @transform_2, window_bounds = array<i64: 64, 1>}, {pipeline_mode = #tpu.pipeline_mode<synchronous>, transform_indices = @transform_3, window_bounds = array<i64: 32, 64>}, {pipeline_mode = #tpu.pipeline_mode<synchronous>, transform_indices = @transform_4, window_bounds = array<i64: 32, 1>}, {pipeline_mode = #tpu.pipeline_mode<synchronous>, transform_indices = @transform_5, window_bounds = array<i64: 32, 1>}, {pipeline_mode = #tpu.pipeline_mode<synchronous>, transform_indices = @transform_6, window_bounds = array<i64: 1, 1>}, {transform_indices = @transform_7, window_bounds = array<i64: 1, 256>}]} {
    %c0 = arith.constant 0 : index
    %c0_0 = arith.constant 0 : index
    %0 = vector.load %arg1[%c0, %c0_0] : memref<256x32xf32, #tpu.memory_space<vmem>>, vector<256x32xf32>
    %1 = arith.truncf %0 : vector<256x32xf32> to vector<256x32xbf16>
    %c0_1 = arith.constant 0 : index
    %c0_2 = arith.constant 0 : index
    %2 = vector.load %arg2[%c0_1, %c0_2] : memref<64x32xbf16, #tpu.memory_space<vmem>>, vector<64x32xbf16>
    %c0_3 = arith.constant 0 : index
    %c0_4 = arith.constant 0 : index
    %3 = vector.load %arg3[%c0_3, %c0_4] : memref<64x1xf32, #tpu.memory_space<vmem>>, vector<64x1xf32>
    %cst = arith.constant dense<0.000000e+00> : vector<64x256xf32>
    %4 = tpu.matmul %2, %1, %cst {dimension_numbers = #tpu.dot_dimension_numbers<[1], [1], [0], [0], [0, 0, 1, 0], [], []>} : vector<64x32xbf16>, vector<256x32xbf16>, vector<64x256xf32> -> vector<64x256xf32>
    %5 = vector.broadcast %3 : vector<64x1xf32> to vector<64x256xf32>
    %6 = arith.addf %4, %5 : vector<64x256xf32>
    %cst_5 = arith.constant 0.000000e+00 : f32
    %7 = vector.broadcast %cst_5 : f32 to vector<64x256xf32>
    %8 = arith.maximumf %6, %7 : vector<64x256xf32>
    %9 = arith.truncf %8 : vector<64x256xf32> to vector<64x256xbf16>
    %c0_6 = arith.constant 0 : index
    %c0_7 = arith.constant 0 : index
    %10 = vector.load %arg4[%c0_6, %c0_7] : memref<32x64xbf16, #tpu.memory_space<vmem>>, vector<32x64xbf16>
    %c0_8 = arith.constant 0 : index
    %c0_9 = arith.constant 0 : index
    %11 = vector.load %arg5[%c0_8, %c0_9] : memref<32x1xf32, #tpu.memory_space<vmem>>, vector<32x1xf32>
    %cst_10 = arith.constant dense<0.000000e+00> : vector<32x256xf32>
    %12 = tpu.matmul %10, %9, %cst_10 {dimension_numbers = #tpu.dot_dimension_numbers<[1], [0], [0], [1], [0, 0, 1, 1], [], []>} : vector<32x64xbf16>, vector<64x256xbf16>, vector<32x256xf32> -> vector<32x256xf32>
    %13 = vector.broadcast %11 : vector<32x1xf32> to vector<32x256xf32>
    %14 = arith.addf %12, %13 : vector<32x256xf32>
    %cst_11 = arith.constant 0.000000e+00 : f32
    %15 = vector.broadcast %cst_11 : f32 to vector<32x256xf32>
    %16 = arith.maximumf %14, %15 : vector<32x256xf32>
    %c0_12 = arith.constant 0 : index
    %c0_13 = arith.constant 0 : index
    %17 = vector.load %arg6[%c0_12, %c0_13] : memref<32x1xf32, #tpu.memory_space<vmem>>, vector<32x1xf32>
    %c0_14 = arith.constant 0 : index
    %c0_15 = arith.constant 0 : index
    %18 = vector.load %arg7[%c0_14, %c0_15] : memref<1x1xf32, #tpu.memory_space<vmem>>, vector<1x1xf32>
    %19 = vector.broadcast %17 : vector<32x1xf32> to vector<32x256xf32>
    %20 = arith.mulf %16, %19 : vector<32x256xf32>
    %cst_16 = arith.constant dense<0.000000e+00> : vector<256xf32>
    %21 = vector.multi_reduction <add>, %20, %cst_16 [0] : vector<32x256xf32> to vector<256xf32>
    %22 = vector.shape_cast %21 : vector<256xf32> to vector<1x256xf32>
    %23 = vector.broadcast %18 : vector<1x1xf32> to vector<1x256xf32>
    %24 = arith.addf %22, %23 : vector<1x256xf32>
    %c0_17 = arith.constant 0 : index
    %c0_18 = arith.constant 0 : index
    %25 = vector.load %arg8[%c0_17, %c0_18] : memref<1x256xf32, #tpu.memory_space<vmem>>, vector<1x256xf32>
    tpu.vector_store %arg8[%c0_17, %c0_18], %24 {strides = array<i32>} : memref<1x256xf32, #tpu.memory_space<vmem>>, vector<1x256xf32>,
    return
  }
  func.func @transform_0(%arg0: i32) -> (i32, i32) {
    %c0_i32 = arith.constant 0 : i32
    %c0_i32_0 = arith.constant 0 : i32
    return %arg0, %c0_i32 : i32, i32
  }
  func.func @transform_1(%arg0: i32) -> (i32, i32) {
    %c0_i32 = arith.constant 0 : i32
    %c0_i32_0 = arith.constant 0 : i32
    %c0_i32_1 = arith.constant 0 : i32
    return %c0_i32, %c0_i32_0 : i32, i32
  }
  func.func @transform_2(%arg0: i32) -> (i32, i32) {
    %c0_i32 = arith.constant 0 : i32
    %c0_i32_0 = arith.constant 0 : i32
    %c0_i32_1 = arith.constant 0 : i32
    return %c0_i32, %c0_i32_0 : i32, i32
  }
  func.func @transform_3(%arg0: i32) -> (i32, i32) {
    %c0_i32 = arith.constant 0 : i32
    %c0_i32_0 = arith.constant 0 : i32
    %c0_i32_1 = arith.constant 0 : i32
    return %c0_i32, %c0_i32_0 : i32, i32
  }
  func.func @transform_4(%arg0: i32) -> (i32, i32) {
    %c0_i32 = arith.constant 0 : i32
    %c0_i32_0 = arith.constant 0 : i32
    %c0_i32_1 = arith.constant 0 : i32
    return %c0_i32, %c0_i32_0 : i32, i32
  }
  func.func @transform_5(%arg0: i32) -> (i32, i32) {
    %c0_i32 = arith.constant 0 : i32
    %c0_i32_0 = arith.constant 0 : i32
    %c0_i32_1 = arith.constant 0 : i32
    return %c0_i32, %c0_i32_0 : i32, i32
  }
  func.func @transform_6(%arg0: i32) -> (i32, i32) {
    %c0_i32 = arith.constant 0 : i32
    %c0_i32_0 = arith.constant 0 : i32
    %c0_i32_1 = arith.constant 0 : i32
    return %c0_i32, %c0_i32_0 : i32, i32
  }
  func.func @transform_7(%arg0: i32) -> (i32, i32) {
    %c0_i32 = arith.constant 0 : i32
    %c0_i32_0 = arith.constant 0 : i32
    return %c0_i32, %arg0 : i32, i32
  }
}

</mosaic_0001>

<llo_original>
// kernel: tpu_custom_call.1
$region0: #{tpu_custom_call.1}
  #allocation0 [shape = 'u32[]', space=smem, size = 0x4, offset = 0x4, fixed_abs, tag = 'smem constant byte address 0x4 - core index']
  #allocation1 [shape = 'u32[144,128]{1,0:T(1,128)}', space=vmem, size = 0x12000, scoped, tag = 'internal scratch']
  #allocation2 [shape = 'f32[1,1]{1,0:T(1,128)S(1)}', space=vmem, size = 0x200, scoped, tag = 'scoped memory for tpu_custom_call.1']
  %s0 = inlined_call_operand.vmem [shape: f32[256,32], index: 0, kind: input, shape index: {}]
  %s1 = inlined_call_operand.vmem [shape: bf16[64,32], index: 1, kind: input, shape index: {}]
  %s2 = inlined_call_operand.vmem [shape: f32[64,1], index: 2, kind: input, shape index: {}]
  %s3 = inlined_call_operand.vmem [shape: bf16[32,64], index: 3, kind: input, shape index: {}]
  %s4 = inlined_call_operand.vmem [shape: f32[32,1], index: 4, kind: input, shape index: {}]
  %s5 = inlined_call_operand.vmem [shape: f32[32,1], index: 5, kind: input, shape index: {}]
  %s6 = inlined_call_operand.<no memory space> [shape: f32[1,1], index: 6, kind: input, shape index: {}]
  %s7 = inlined_call_operand.hbm [shape: f32[1,256], index: 7, kind: output, shape index: {}]
  %s8 = sld [smem:[#allocation0]]
  $region38: #{tpu_custom_call.1} parent=0
    _
  %s10 = ssub.s32 1, %s8
  %s11 = scalar_select 0, %s10, %s8
  %v12 = vstv %s6
  %13 = vst [vmem:[#allocation2] sm:$0x1] %v12
  $region1: #{tpu_custom_call.1} parent=0
    #allocation3 [shape = 'u8[1024]{0}', space=vmem, size = 0x400, scoped, tag = 'output window, operand 0, single buffered']
    #allocation4 [shape = 's32[1]{0}', space=sflag, size = 0x4, scoped, tag = 'scoped memory for tpu_custom_call.1']
    %14 = vsyncpa [#allocation4], 0
    // Predicated region
    $region2: #{tpu_custom_call.1} parent=1 // pred_check
      _
    $region3: #{tpu_custom_call.1} parent=1 // pred_check_branch
      %16 = sbr.rel (0) target = $region5
    $region4: #{tpu_custom_call.1} parent=1 // pred_region
      _
    $region5: #{tpu_custom_call.1} parent=1 // pred_fallthru
      _
    // Predicated region
    $region6: #{tpu_custom_call.1} parent=1 // pred_check
      _
    $region7: #{tpu_custom_call.1} parent=1 // pred_check_branch
      %18 = sbr.rel (0) target = $region9
    $region8: #{tpu_custom_call.1} parent=1 // pred_region
      _
    $region9: #{tpu_custom_call.1} parent=1 // pred_fallthru
      _
    // Predicated region
    $region10: #{tpu_custom_call.1} parent=1 // pred_check
      _
    $region11: #{tpu_custom_call.1} parent=1 // pred_check_branch
      %20 = sbr.rel (0) target = $region13
    $region12: #{tpu_custom_call.1} parent=1 // pred_region
      _
    $region13: #{tpu_custom_call.1} parent=1 // pred_fallthru
      _
    // Predicated region
    $region14: #{tpu_custom_call.1} parent=1 // pred_check
      _
    $region15: #{tpu_custom_call.1} parent=1 // pred_check_branch
      %22 = sbr.rel (0) target = $region17
    $region16: #{tpu_custom_call.1} parent=1 // pred_region
      _
    $region17: #{tpu_custom_call.1} parent=1 // pred_fallthru
      _
    // Predicated region
    $region18: #{tpu_custom_call.1} parent=1 // pred_check
      _
    $region19: #{tpu_custom_call.1} parent=1 // pred_check_branch
      %24 = sbr.rel (0) target = $region21
    $region20: #{tpu_custom_call.1} parent=1 // pred_region
      _
    $region21: #{tpu_custom_call.1} parent=1 // pred_fallthru
      _
    // Predicated region
    $region22: #{tpu_custom_call.1} parent=1 // pred_check
      _
    $region23: #{tpu_custom_call.1} parent=1 // pred_check_branch
      %26 = sbr.rel (0) target = $region25
    $region24: #{tpu_custom_call.1} parent=1 // pred_region
      _
    $region25: #{tpu_custom_call.1} parent=1 // pred_fallthru
      _
    // Predicated region
    $region26: #{tpu_custom_call.1} parent=1 // pred_check
      _
    $region27: #{tpu_custom_call.1} parent=1 // pred_check_branch
      %28 = sbr.rel (0) target = $region29
    $region28: #{tpu_custom_call.1} parent=1 // pred_region
      _
    $region29: #{tpu_custom_call.1} parent=1 // pred_fallthru
      _
    %v30 = vld [vmem:[%s0] sm:$0xff]
    %v31 = vld [vmem:[%s0 + $0x8] sm:$0xff]
    %v32 = vld [vmem:[%s0 + $0x10] sm:$0xff]
    %v33 = vld [vmem:[%s0 + $0x18] sm:$0xff]
    %v34 = vld [vmem:[%s0 + $0x20] sm:$0xff]
    %v35 = vld [vmem:[%s0 + $0x28] sm:$0xff]
    %v36 = vld [vmem:[%s0 + $0x30] sm:$0xff]
    %v37 = vld [vmem:[%s0 + $0x38] sm:$0xff]
    %v38 = vld [vmem:[%s0 + $0x40] sm:$0xff]
    %v39 = vld [vmem:[%s0 + $0x48] sm:$0xff]
    %v40 = vld [vmem:[%s0 + $0x50] sm:$0xff]
    %v41 = vld [vmem:[%s0 + $0x58] sm:$0xff]
    %v42 = vld [vmem:[%s0 + $0x60] sm:$0xff]
    %v43 = vld [vmem:[%s0 + $0x68] sm:$0xff]
    %v44 = vld [vmem:[%s0 + $0x70] sm:$0xff]
    %v45 = vld [vmem:[%s0 + $0x78] sm:$0xff]
    %v46 = vld [vmem:[%s0 + $0x80] sm:$0xff]
    %v47 = vld [vmem:[%s0 + $0x88] sm:$0xff]
    %v48 = vld [vmem:[%s0 + $0x90] sm:$0xff]
    %v49 = vld [vmem:[%s0 + $0x98] sm:$0xff]
    %v50 = vld [vmem:[%s0 + $0xa0] sm:$0xff]
    %v51 = vld [vmem:[%s0 + $0xa8] sm:$0xff]
    %v52 = vld [vmem:[%s0 + $0xb0] sm:$0xff]
    %v53 = vld [vmem:[%s0 + $0xb8] sm:$0xff]
    %v54 = vld [vmem:[%s0 + $0xc0] sm:$0xff]
    %v55 = vld [vmem:[%s0 + $0xc8] sm:$0xff]
    %v56 = vld [vmem:[%s0 + $0xd0] sm:$0xff]
    %v57 = vld [vmem:[%s0 + $0xd8] sm:$0xff]
    %v58 = vld [vmem:[%s0 + $0xe0] sm:$0xff]
    %v59 = vld [vmem:[%s0 + $0xe8] sm:$0xff]
    %v60 = vld [vmem:[%s0 + $0xf0] sm:$0xff]
    %v61 = vld [vmem:[%s0 + $0xf8] sm:$0xff]
    %v62 = vpack.c.bf16 %v31, %v30
    %v63 = vpack.c.bf16 %v33, %v32
    %v64 = vpack.c.bf16 %v35, %v34
    %v65 = vpack.c.bf16 %v37, %v36
    %v66 = vpack.c.bf16 %v39, %v38
    %v67 = vpack.c.bf16 %v41, %v40
    %v68 = vpack.c.bf16 %v43, %v42
    %v69 = vpack.c.bf16 %v45, %v44
    %v70 = vpack.c.bf16 %v47, %v46
    %v71 = vpack.c.bf16 %v49, %v48
    %v72 = vpack.c.bf16 %v51, %v50
    %v73 = vpack.c.bf16 %v53, %v52
    %v74 = vpack.c.bf16 %v55, %v54
    %v75 = vpack.c.bf16 %v57, %v56
    %v76 = vpack.c.bf16 %v59, %v58
    %v77 = vpack.c.bf16 %v61, %v60
    %v78 = vld [vmem:[%s1] sm:$0xf]
    %v79 = vld [vmem:[%s1 + $0x4] sm:$0xf]
    %v80 = vld [vmem:[%s1 + $0x8] sm:$0xf]
    %v81 = vld [vmem:[%s1 + $0xc] sm:$0xf]
    %v82 = vld [vmem:[%s1 + $0x10] sm:$0xf]
    %v83 = vld [vmem:[%s1 + $0x14] sm:$0xf]
    %v84 = vld [vmem:[%s1 + $0x18] sm:$0xf]
    %v85 = vld [vmem:[%s1 + $0x1c] sm:$0xf]
    %v86 = vld [vmem:[%s2] sm:$0xff]
    %v87 = vld [vmem:[%s2 + $0x8] sm:$0xff]
    %v88 = vld [vmem:[%s2 + $0x10] sm:$0xff]
    %v89 = vld [vmem:[%s2 + $0x18] sm:$0xff]
    %v90 = vld [vmem:[%s2 + $0x20] sm:$0xff]
    %v91 = vld [vmem:[%s2 + $0x28] sm:$0xff]
    %v92 = vld [vmem:[%s2 + $0x30] sm:$0xff]
    %v93 = vld [vmem:[%s2 + $0x38] sm:$0xff]
    %95 = vset.pattern.permute.xlu0 0
    %96 = vperm.xlu0 %95, %v86
    %v97 = vpop.permute.xlu0 %96
    %100 = vset.pattern.permute.xlu0 0
    %101 = vperm.xlu0 %100, %v87
    %v102 = vpop.permute.xlu0 %101
    %105 = vset.pattern.permute.xlu0 0
    %106 = vperm.xlu0 %105, %v88
    %v107 = vpop.permute.xlu0 %106
    %110 = vset.pattern.permute.xlu0 0
    %111 = vperm.xlu0 %110, %v89
    %v112 = vpop.permute.xlu0 %111
    %115 = vset.pattern.permute.xlu0 0
    %116 = vperm.xlu0 %115, %v90
    %v117 = vpop.permute.xlu0 %116
    %120 = vset.pattern.permute.xlu0 0
    %121 = vperm.xlu0 %120, %v91
    %v122 = vpop.permute.xlu0 %121
    %125 = vset.pattern.permute.xlu0 0
    %126 = vperm.xlu0 %125, %v92
    %v127 = vpop.permute.xlu0 %126
    %130 = vset.pattern.permute.xlu0 0
    %131 = vperm.xlu0 %130, %v93
    %v132 = vpop.permute.xlu0 %131
    %v142 = vunpack.c.l.b16 %v78
    %v143 = vunpack.c.l.b16 %v79
    %v144 = vunpack.c.l.b16 %v80
    %v145 = vunpack.c.l.b16 %v81
    %v146 = vunpack.c.l.b16 %v82
    %v147 = vunpack.c.l.b16 %v83
    %v148 = vunpack.c.l.b16 %v84
    %v149 = vunpack.c.l.b16 %v85
    %v150 = vpack.c.b16 %v143, %v142
    %v151 = vpack.c.b16 %v145, %v144
    %v152 = vpack.c.b16 %v147, %v146
    %v153 = vpack.c.b16 %v149, %v148
    %vm154 = vcmask 261120
    %v156 = vsel %vm154, %v150, 0
    %v159 = vsel %vm154, %v151, 0
    %v162 = vsel %vm154, %v152, 0
    %v165 = vsel %vm154, %v153, 0
    %v168 = vsel %vm154, %v62, 0
    %v171 = vsel %vm154, %v63, 0
    %v174 = vsel %vm154, %v64, 0
    %v177 = vsel %vm154, %v65, 0
    %v180 = vsel %vm154, %v66, 0
    %v183 = vsel %vm154, %v67, 0
    %v186 = vsel %vm154, %v68, 0
    %v189 = vsel %vm154, %v69, 0
    %v192 = vsel %vm154, %v70, 0
    %v195 = vsel %vm154, %v71, 0
    %v198 = vsel %vm154, %v72, 0
    %v201 = vsel %vm154, %v73, 0
    %v204 = vsel %vm154, %v74, 0
    %v207 = vsel %vm154, %v75, 0
    %v210 = vsel %vm154, %v76, 0
    %v213 = vsel %vm154, %v77, 0
    %215 = vmatprep.subr.bf16.mxu0 0
    %216 = vmatpush1.bf16.xpose.msra.mxu0 %v189
    %217 = vmatprep.subr.bf16.mxu0 0
    %218 = vmatpush1.bf16.xpose.msra.mxu0 %v186
    %219 = vmatprep.subr.bf16.mxu0 0
    %220 = vmatpush1.bf16.xpose.msra.mxu0 %v183
    %221 = vmatprep.subr.bf16.mxu0 0
    %222 = vmatpush1.bf16.xpose.msra.mxu0 %v180
    %223 = vmatprep.subr.bf16.mxu0 0
    %224 = vmatpush1.bf16.xpose.msra.mxu0 %v177
    %225 = vmatprep.subr.bf16.mxu0 0
    %226 = vmatpush1.bf16.xpose.msra.mxu0 %v174
    %227 = vmatprep.subr.bf16.mxu0 0
    %228 = vmatpush1.bf16.xpose.msra.mxu0 %v171
    %229 = vmatprep.subr.bf16.mxu0 0
    %230 = vmatpush1.bf16.xpose.msra.mxu0 %v168
    %231 = vmatprep.subr.bf16.mxu0 0
    %232 = vmatpush2.bf16.xpose.msra.mxu0 %v213
    %233 = vmatprep.subr.bf16.mxu0 0
    %234 = vmatpush2.bf16.xpose.msra.mxu0 %v210
    %235 = vmatprep.subr.bf16.mxu0 0
    %236 = vmatpush2.bf16.xpose.msra.mxu0 %v207
    %237 = vmatprep.subr.bf16.mxu0 0
    %238 = vmatpush2.bf16.xpose.msra.mxu0 %v204
    %239 = vmatprep.subr.bf16.mxu0 0
    %240 = vmatpush2.bf16.xpose.msra.mxu0 %v201
    %241 = vmatprep.subr.bf16.mxu0 0
    %242 = vmatpush2.bf16.xpose.msra.mxu0 %v198
    %243 = vmatprep.subr.bf16.mxu0 0
    %244 = vmatpush2.bf16.xpose.msra.mxu0 %v195
    %245 = vmatprep.subr.bf16.mxu0 0
    %246 = vmatpush2.bf16.xpose.msra.mxu0 %v192
    %247 = vmatprep.mubr.bf16.mxu0 0
    %248 = vmatmul.mubr.bf16.gmra.mxu0 %v156
    %v249 = vpop.f32.mrf.mxu0
    %v250 = vadd.f32 %v97, %v249
    %v251 = vpop.f32.mrf.mxu0
    %v252 = vadd.f32 %v97, %v251
    %v253 = vpop.f32.mrf.mxu0
    %v254 = vadd.f32 %v102, %v253
    %v255 = vpop.f32.mrf.mxu0
    %v256 = vadd.f32 %v102, %v255
    %257 = vmatprep.mubr.bf16.mxu0 0
    %258 = vmatmul.mubr.bf16.gmra.mxu0 %v159
    %v259 = vpop.f32.mrf.mxu0
    %v260 = vadd.f32 %v107, %v259
    %v261 = vpop.f32.mrf.mxu0
    %v262 = vadd.f32 %v107, %v261
    %v263 = vpop.f32.mrf.mxu0
    %v264 = vadd.f32 %v112, %v263
    %v265 = vpop.f32.mrf.mxu0
    %v266 = vadd.f32 %v112, %v265
    %267 = vmatprep.mubr.bf16.mxu0 0
    %268 = vmatmul.mubr.bf16.gmra.mxu0 %v162
    %v269 = vpop.f32.mrf.mxu0
    %v270 = vadd.f32 %v117, %v269
    %v271 = vpop.f32.mrf.mxu0
    %v272 = vadd.f32 %v117, %v271
    %v273 = vpop.f32.mrf.mxu0
    %v274 = vadd.f32 %v122, %v273
    %v275 = vpop.f32.mrf.mxu0
    %v276 = vadd.f32 %v122, %v275
    %277 = vmatprep.mubr.bf16.mxu0 0
    %278 = vmatmul.mubr.bf16.gmra.mxu0 %v165
    %v279 = vpop.f32.mrf.mxu0
    %v280 = vadd.f32 %v127, %v279
    %v281 = vpop.f32.mrf.mxu0
    %v282 = vadd.f32 %v127, %v281
    %v283 = vpop.f32.mrf.mxu0
    %v284 = vadd.f32 %v132, %v283
    %v285 = vpop.f32.mrf.mxu0
    %v286 = vadd.f32 %v132, %v285
    %287 = vdwg.mxu0
    %v288 = vmax.f32 %v250, 0.0
    %v289 = vmax.f32 %v252, 0.0
    %v290 = vmax.f32 %v254, 0.0
    %v291 = vmax.f32 %v256, 0.0
    %v292 = vmax.f32 %v260, 0.0
    %v293 = vmax.f32 %v262, 0.0
    %v294 = vmax.f32 %v264, 0.0
    %v295 = vmax.f32 %v266, 0.0
    %v296 = vmax.f32 %v270, 0.0
    %v297 = vmax.f32 %v272, 0.0
    %v298 = vmax.f32 %v274, 0.0
    %v299 = vmax.f32 %v276, 0.0
    %v300 = vmax.f32 %v280, 0.0
    %v301 = vmax.f32 %v282, 0.0
    %v302 = vmax.f32 %v284, 0.0
    %v303 = vmax.f32 %v286, 0.0
    %v304 = vpack.c.bf16 %v290, %v288
    %v305 = vpack.c.bf16 %v291, %v289
    %v306 = vpack.c.bf16 %v294, %v292
    %v307 = vpack.c.bf16 %v295, %v293
    %v308 = vpack.c.bf16 %v298, %v296
    %v309 = vpack.c.bf16 %v299, %v297
    %v310 = vpack.c.bf16 %v302, %v300
    %v311 = vpack.c.bf16 %v303, %v301
    %v312 = vld [vmem:[%s3] sm:$0xf]
    %v313 = vld [vmem:[%s3 + $0x4] sm:$0xf]
    %v314 = vld [vmem:[%s3 + $0x8] sm:$0xf]
    %v315 = vld [vmem:[%s3 + $0xc] sm:$0xf]
    %v316 = vld [vmem:[%s4] sm:$0xff]
    %v317 = vld [vmem:[%s4 + $0x8] sm:$0xff]
    %v318 = vld [vmem:[%s4 + $0x10] sm:$0xff]
    %v319 = vld [vmem:[%s4 + $0x18] sm:$0xff]
    %321 = vset.pattern.permute.xlu0 0
    %322 = vperm.xlu0 %321, %v316
    %v323 = vpop.permute.xlu0 %322
    %326 = vset.pattern.permute.xlu0 0
    %327 = vperm.xlu0 %326, %v317
    %v328 = vpop.permute.xlu0 %327
    %331 = vset.pattern.permute.xlu0 0
    %332 = vperm.xlu0 %331, %v318
    %v333 = vpop.permute.xlu0 %332
    %336 = vset.pattern.permute.xlu0 0
    %337 = vperm.xlu0 %336, %v319
    %v338 = vpop.permute.xlu0 %337
    %v344 = vunpack.c.l.b16 %v312
    %v345 = vunpack.c.l.b16 %v313
    %v346 = vunpack.c.l.b16 %v314
    %v347 = vunpack.c.l.b16 %v315
    %v348 = vpack.c.b16 %v345, %v344
    %v349 = vpack.c.b16 %v347, %v346
    %vm350 = vcmask 523264
    %v352 = vsel %vm350, %v348, 0
    %v355 = vsel %vm350, %v349, 0
    %357 = vmatprep.subr.bf16.mxu0 0
    %358 = vmatpush1.bf16.msra.mxu0 0
    %359 = vmatprep.subr.bf16.mxu0 0
    %360 = vmatpush1.bf16.msra.mxu0 0
    %361 = vmatprep.subr.bf16.mxu0 0
    %362 = vmatpush1.bf16.msra.mxu0 0
    %363 = vmatprep.subr.bf16.mxu0 0
    %364 = vmatpush1.bf16.msra.mxu0 0
    %365 = vmatprep.subr.bf16.mxu0 %v311
    %366 = vmatpush1.bf16.msra.mxu0 %v310
    %367 = vmatprep.subr.bf16.mxu0 %v309
    %368 = vmatpush1.bf16.msra.mxu0 %v308
    %369 = vmatprep.subr.bf16.mxu0 %v307
    %370 = vmatpush1.bf16.msra.mxu0 %v306
    %371 = vmatprep.subr.bf16.mxu0 %v305
    %372 = vmatpush1.bf16.msra.mxu0 %v304
    %373 = vmatprep.subr.bf16.mxu0 0
    %374 = vmatpush2.bf16.msra.mxu0 0
    %375 = vmatprep.subr.bf16.mxu0 0
    %376 = vmatpush2.bf16.msra.mxu0 0
    %377 = vmatprep.subr.bf16.mxu0 0
    %378 = vmatpush2.bf16.msra.mxu0 0
    %379 = vmatprep.subr.bf16.mxu0 0
    %380 = vmatpush2.bf16.msra.mxu0 0
    %381 = vmatprep.subr.bf16.mxu0 0
    %382 = vmatpush2.bf16.msra.mxu0 0
    %383 = vmatprep.subr.bf16.mxu0 0
    %384 = vmatpush2.bf16.msra.mxu0 0
    %385 = vmatprep.subr.bf16.mxu0 0
    %386 = vmatpush2.bf16.msra.mxu0 0
    %387 = vmatprep.subr.bf16.mxu0 0
    %388 = vmatpush2.bf16.msra.mxu0 0
    %389 = vmatprep.mubr.bf16.mxu0 0
    %390 = vmatmul.mubr.bf16.gmra.mxu0 %v352
    %v391 = vpop.f32.mrf.mxu0
    %v392 = vadd.f32 %v323, %v391
    %v393 = vpop.f32.mrf.mxu0
    %v394 = vadd.f32 %v323, %v393
    %v395 = vpop.f32.mrf.mxu0
    %v396 = vadd.f32 %v328, %v395
    %v397 = vpop.f32.mrf.mxu0
    %v398 = vadd.f32 %v328, %v397
    %399 = vmatprep.mubr.bf16.mxu0 0
    %400 = vmatmul.mubr.bf16.gmra.mxu0 %v355
    %v401 = vpop.f32.mrf.mxu0
    %v402 = vadd.f32 %v333, %v401
    %v403 = vpop.f32.mrf.mxu0
    %v404 = vadd.f32 %v333, %v403
    %v405 = vpop.f32.mrf.mxu0
    %v406 = vadd.f32 %v338, %v405
    %v407 = vpop.f32.mrf.mxu0
    %v408 = vadd.f32 %v338, %v407
    %409 = vdwg.mxu0
    %v410 = vmax.f32 %v392, 0.0
    %v411 = vmax.f32 %v394, 0.0
    %v412 = vmax.f32 %v396, 0.0
    %v413 = vmax.f32 %v398, 0.0
    %v414 = vmax.f32 %v402, 0.0
    %v415 = vmax.f32 %v404, 0.0
    %v416 = vmax.f32 %v406, 0.0
    %v417 = vmax.f32 %v408, 0.0
    %v418 = vld [vmem:[%s5] sm:$0xff]
    %v419 = vld [vmem:[%s5 + $0x8] sm:$0xff]
    %v420 = vld [vmem:[%s5 + $0x10] sm:$0xff]
    %v421 = vld [vmem:[%s5 + $0x18] sm:$0xff]
    %v422 = vld [vmem:[#allocation2] sm:$0x1]
    %424 = vset.pattern.permute.xlu0 0
    %425 = vperm.xlu0 %424, %v418
    %v426 = vpop.permute.xlu0 %425
    %429 = vset.pattern.permute.xlu0 0
    %430 = vperm.xlu0 %429, %v419
    %v431 = vpop.permute.xlu0 %430
    %434 = vset.pattern.permute.xlu0 0
    %435 = vperm.xlu0 %434, %v420
    %v436 = vpop.permute.xlu0 %435
    %439 = vset.pattern.permute.xlu0 0
    %440 = vperm.xlu0 %439, %v421
    %v441 = vpop.permute.xlu0 %440
    %v443 = vmul.f32 %v410, %v426
    %v444 = vmul.f32 %v411, %v426
    %v445 = vmul.f32 %v412, %v431
    %v446 = vmul.f32 %v413, %v431
    %v447 = vmul.f32 %v414, %v436
    %v448 = vmul.f32 %v415, %v436
    %v449 = vmul.f32 %v416, %v441
    %v450 = vmul.f32 %v417, %v441
    %v451 = vadd.f32 %v443, %v445
    %v452 = vadd.f32 %v451, %v447
    %v453 = vadd.f32 %v452, %v449
    %v454 = vrot.slane %v453, 4
    %v455 = vadd.f32 %v453, %v454
    %v456 = vrot.slane %v455, 2
    %v457 = vadd.f32 %v455, %v456
    %v458 = vrot.slane %v457, 1
    %v459 = vadd.f32 %v457, %v458
    %v460 = vadd.f32 %v444, %v446
    %v461 = vadd.f32 %v460, %v448
    %v462 = vadd.f32 %v461, %v450
    %v463 = vrot.slane %v462, 4
    %v464 = vadd.f32 %v462, %v463
    %v465 = vrot.slane %v464, 2
    %v466 = vadd.f32 %v464, %v465
    %v467 = vrot.slane %v466, 1
    %v468 = vadd.f32 %v466, %v467
    %470 = vset.pattern.permute.xlu0 0
    %471 = vperm.xlu0 %470, %v422
    %v472 = vpop.permute.xlu0 %471
    %v474 = vlaneseq
    %v475 = vshrl.u32 %v474, 7
    %v476 = vsub.s32 0, %v475
    %v477 = vrot.slane %v472, %v476
    %v478 = vadd.f32 %v459, %v477
    %v479 = vadd.f32 %v468, %v477
    %v482 = vcombine.low %v478, %v479
    %v484 = vunpack.c.l.s4 1966171168
    %v485 = vunpack.c.0.s8 %v484
    %v486 = vlaneseq
    %v487 = vshrl.u32 %v486, 7
    %v488 = vsub.s32 %v485, %v487
    %v489 = vrot.slane %v482, %v488
    %v491 = vunpack.c.l.s4 1966171168
    %v492 = vunpack.c.0.s8 %v491
    %v493 = vlaneseq
    %v494 = vshrl.u32 %v493, 7
    %v495 = vsub.s32 %v492, %v494
    %v496 = vrot.slane %v489, %v495
    %v498 = vlaneseq
    %vm499 = vcmp.ge.s32.totalorder %v498, 0
    %vm500 = vcmp.lt.s32.totalorder %v498, 256
    %vm501 = vmand %vm499, %vm500
    %502 = vst.msk [vmem:[#allocation3] sm:$0x3] %vm501, %v496
    // Predicated region
    $region30: #{tpu_custom_call.1} parent=1 // pred_check
      _
    $region31: #{tpu_custom_call.1} parent=1 // pred_check_branch
      %504 = sbr.rel (0) target = $region33
    $region32: #{tpu_custom_call.1} parent=1 // pred_region
      %s506 = ssub.s32 32, 32
      %507 = vsyncadd [#allocation4], %s506
      %s509 = sshll.u32 [#allocation3], 4
      %s510 = int_to_ptr.vmem [resolvable:$true] %s509
      %512 = dma.vmem_to_hbm [thread:$0]  %s510, 32, %s7, [#allocation4]
    $region33: #{tpu_custom_call.1} parent=1 // pred_fallthru
      _
    // Predicated region
    $region34: #{tpu_custom_call.1} parent=1 // pred_check
      _
    $region35: #{tpu_custom_call.1} parent=1 // pred_check_branch
      %514 = sbr.rel (0) target = $region37
    $region36: #{tpu_custom_call.1} parent=1 // pred_region
      %515 = dma.done [#allocation4], 32
    $region37: #{tpu_custom_call.1} parent=1 // pred_fallthru
      _
    %516 = vsyncpa [#allocation4], 1

</llo_original>
